<compile_context>
chip_gen: v5e
topology: v5e:2x2
jax: 0.10.0
libtpu: 0.0.40
codegen_flags: <defaults>
</compile_context>

<pallas_src>
import functools

import jax
import jax.numpy as jnp
from jax import lax
from jax.experimental import pallas as pl
from jax.experimental.pallas import tpu as pltpu


def _drce_kernel(pred_ref, tgt_ref, out_ref, acc_ref, *, n_total, eps, needs_mask):
    """Per-tile body.

    pred_ref: (1, C, TS, 128)  native dtype
    tgt_ref : (1, TS, 128)     int32
    out_ref : (1, 1, 1)        f32 per-batch loss
    acc_ref : (3, 128)         f32 lane-row accumulators [picked, lse, colsum]
    """
    n = pl.program_id(1)
    num_n = pl.num_programs(1)
    C = pred_ref.shape[1]
    TS = pred_ref.shape[2]
    tile_flat = TS * 128

    @pl.when(n == 0)
    def _():
        acc_ref[...] = jnp.zeros_like(acc_ref)

    tgt = tgt_ref[0]                                       # (TS, 128) int32

    # ---- pass 1: per-position max over classes (element-wise VALU maxes) ----
    m = pred_ref[0, 0].astype(jnp.float32)                 # (TS, 128)
    for c in range(1, C):
        m = jnp.maximum(m, pred_ref[0, c].astype(jnp.float32))

    # ---- pass 2: exp-sum, picked logit, per-position pred sum ----
    expsum = jnp.zeros_like(m)
    picked = jnp.zeros_like(m)
    colsum = jnp.zeros_like(m)
    for c in range(C):
        x = pred_ref[0, c].astype(jnp.float32)
        expsum = expsum + jnp.exp(x - m)                   # EUP
        picked = picked + jnp.where(tgt == c, x, 0.0)      # scalar class-id compare
        colsum = colsum + x

    lse = jnp.log(expsum) + m                              # (TS, 128)

    if needs_mask:
        # Wrapper padded N up to a tile multiple: pred padded with 0 (colsum
        # contribution 0), target padded with C (picked contribution 0); only
        # lse needs masking.  Mask is all-true on every tile but the last.
        sub = lax.broadcasted_iota(jnp.int32, (TS, 128), 0)
        lane = lax.broadcasted_iota(jnp.int32, (TS, 128), 1)
        pos = n * tile_flat + sub * 128 + lane
        lse = jnp.where(pos < n_total, lse, 0.0)

    # Sublane-reduce each quantity to one (1, 128) row; accumulate into a
    # single-vreg scratch (cross-lane collapse deferred to finalize).
    acc_ref[0:1, :] = acc_ref[0:1, :] + jnp.sum(picked, axis=0, keepdims=True)
    acc_ref[1:2, :] = acc_ref[1:2, :] + jnp.sum(lse, axis=0, keepdims=True)
    acc_ref[2:3, :] = acc_ref[2:3, :] + jnp.sum(colsum, axis=0, keepdims=True)

    @pl.when(n == num_n - 1)
    def _():
        inter = jnp.sum(acc_ref[0:1, :], axis=1, keepdims=True)     # (1, 1)
        lse_sum = jnp.sum(acc_ref[1:2, :], axis=1, keepdims=True)   # (1, 1)
        sum_pred = jnp.sum(acc_ref[2:3, :], axis=1, keepdims=True)  # (1, 1)
        n_f = jnp.float32(n_total)
        # sum(one_hot(target)) == N exactly (targets assumed in [0, C)).
        dice = 1.0 - 2.0 * inter / (sum_pred + n_f + eps)
        ce = (lse_sum - inter) / n_f
        out_ref[0] = dice + ce                                      # (1, 1) store


def _choose_tile_s(s_total, c, itemsize):
    """Sublane-tile size targeting ~6 MiB of pred per grid step."""
    target_bytes = 6 * 1024 * 1024
    ts = target_bytes // max(1, c * 128 * itemsize)
    ts = int(max(32, (ts // 32) * 32))        # aligned for any pred dtype packing
    return s_total if ts >= s_total else ts


def dice_regularized_cross_entropy_pallas(pred, target, reduction='mean', eps=1e-6):
    """pred: (B, C, H, W) float; target: (B, H, W) int. Matches the PyTorch module."""
    if reduction not in ('mean', 'sum', 'none'):
        raise ValueError(
            "invalid reduction, {}. Valid are 'mean', 'sum', 'none'".format(reduction))
    B, C, H, W = pred.shape
    N = H * W

    itemsize = jnp.dtype(pred.dtype).itemsize
    s_total = (N + 127) // 128
    TS = _choose_tile_s(s_total, C, itemsize)
    if TS >= s_total:
        TS = s_total
        s_pad = s_total                      # single tile along N; block == full dim
    else:
        s_pad = ((s_total + TS - 1) // TS) * TS
    n_pad = s_pad * 128

    pred_r = pred.reshape(B, C, N)           # native dtype; reshapes are free
    tgt_r = target.reshape(B, N).astype(jnp.int32)
    if n_pad != N:
        pred_r = jnp.pad(pred_r, ((0, 0), (0, 0), (0, n_pad - N)))
        tgt_r = jnp.pad(tgt_r, ((0, 0), (0, n_pad - N)), constant_values=C)
    pred_r = pred_r.reshape(B, C, s_pad, 128)
    tgt_r = tgt_r.reshape(B, s_pad, 128)

    num_n = s_pad // TS
    kernel = functools.partial(
        _drce_kernel, n_total=N, eps=eps, needs_mask=bool(n_pad != N))

    per_batch = pl.pallas_call(
        kernel,
        out_shape=jax.ShapeDtypeStruct((B, 1, 1), jnp.float32),
        grid_spec=pltpu.PrefetchScalarGridSpec(
            num_scalar_prefetch=0,
            grid=(B, num_n),
            in_specs=[
                pl.BlockSpec((1, C, TS, 128), lambda b, n: (b, 0, n, 0)),
                pl.BlockSpec((1, TS, 128), lambda b, n: (b, n, 0)),
            ],
            out_specs=pl.BlockSpec((1, 1, 1), lambda b, n: (b, 0, 0)),
            scratch_shapes=[pltpu.VMEM((3, 128), jnp.float32)],
        ),
        compiler_params=pltpu.CompilerParams(
            dimension_semantics=("parallel", "arbitrary"),
            vmem_limit_bytes=32 * 1024 * 1024),
    )(pred_r, tgt_r)

    per_batch = per_batch[:, 0, 0]                       # (B,)
    if reduction == 'mean':
        return jnp.mean(per_batch)
    if reduction == 'sum':
        return jnp.sum(per_batch)
    return per_batch


def _reference(pred, target, eps=1e-6):
    """Plain-JAX reference mirroring the PyTorch module (mean reduction)."""
    B, C, H, W = pred.shape
    pred = pred.astype(jnp.float32)
    onehot = jax.nn.one_hot(target, C, axis=1, dtype=pred.dtype)      # (B, C, H, W)
    inter = jnp.sum(pred * onehot, axis=(1, 2, 3))
    card = jnp.sum(pred + onehot, axis=(1, 2, 3))
    dice = 1.0 - 2.0 * inter / (card + eps)
    logits = pred.reshape(B, C, -1)                                   # (B, C, N)
    lse = jax.scipy.special.logsumexp(logits, axis=1)                 # (B, N)
    picked = jnp.take_along_axis(logits, target.reshape(B, 1, -1), axis=1)[:, 0, :]
    ce = jnp.mean(lse - picked, axis=-1)                              # (B,)
    return jnp.mean(dice + ce)


if __name__ == "__main__":
    key = jax.random.PRNGKey(0)
    kp, kt, kp2, kt2 = jax.random.split(key, 4)

    # Main case: lane-aligned spatial size.
    B, C, H, W = 2, 4, 16, 16
    pred = jax.random.normal(kp, (B, C, H, W), dtype=jnp.float32)
    target = jax.random.randint(kt, (B, H, W), 0, C, dtype=jnp.int32)
    loss = jax.block_until_ready(dice_regularized_cross_entropy_pallas(pred, target))
    ref = _reference(pred, target)
    assert jnp.allclose(loss, ref, rtol=1e-5, atol=1e-5), (loss, ref)

    # Padded-tail case: N = 100 is not a multiple of 128 (exercises masking).
    B2, C2, H2, W2 = 2, 3, 10, 10
    pred2 = jax.random.normal(kp2, (B2, C2, H2, W2), dtype=jnp.float32)
    target2 = jax.random.randint(kt2, (B2, H2, W2), 0, C2, dtype=jnp.int32)
    loss2 = jax.block_until_ready(dice_regularized_cross_entropy_pallas(pred2, target2))
    ref2 = _reference(pred2, target2)
    assert jnp.allclose(loss2, ref2, rtol=1e-5, atol=1e-5), (loss2, ref2)

    print("KERNEL_OK")
</pallas_src>

<mosaic_0001>
module attributes {stable_mosaic.version = 11 : i64} {
  func.func @_drce_kernel(%arg0: i32, %arg1: i32, %arg2: memref<1x4x2x128xf32, #tpu.memory_space<vmem>>, %arg3: memref<1x2x128xi32, #tpu.memory_space<vmem>>, %arg4: memref<1x1x1xf32, #tpu.memory_space<vmem>>, %arg5: memref<3x128xf32, #tpu.memory_space<vmem>>) attributes {dimension_semantics = [#tpu.dimension_semantics<parallel>, #tpu.dimension_semantics<arbitrary>], iteration_bounds = array<i64: 2, 1>, scalar_prefetch = 0 : i64, scratch_operands = 1 : i64, tpu.core_type = #tpu.core_type<tc>, window_params = [{transform_indices = @transform_0, window_bounds = array<i64: 1, 4, 2, 128>}, {transform_indices = @transform_1, window_bounds = array<i64: 1, 2, 128>}, {transform_indices = @transform_2, window_bounds = array<i64: 1, 1, 1>}]} {
    %c0_i32 = arith.constant 0 : i32
    %0 = arith.cmpi eq, %arg1, %c0_i32 : i32
    %1 = arith.extui %0 : i1 to i32
    %c0_i32_0 = arith.constant 0 : i32
    %2 = arith.cmpi ne, %1, %c0_i32_0 : i32
    scf.if %2 {
      %cst_56 = arith.constant 0.000000e+00 : f32
      %83 = vector.broadcast %cst_56 : f32 to vector<3x128xf32>
      %c0_57 = arith.constant 0 : index
      %c0_58 = arith.constant 0 : index
      %84 = vector.load %arg5[%c0_57, %c0_58] : memref<3x128xf32, #tpu.memory_space<vmem>>, vector<3x128xf32>
      tpu.vector_store %arg5[%c0_57, %c0_58], %83 {strides = array<i32>} : memref<3x128xf32, #tpu.memory_space<vmem>>, vector<3x128xf32>,
    } else {
    }
    %c0 = arith.constant 0 : index
    %c0_1 = arith.constant 0 : index
    %c0_2 = arith.constant 0 : index
    %3 = vector.load %arg3[%c0, %c0_1, %c0_2] : memref<1x2x128xi32, #tpu.memory_space<vmem>>, vector<1x2x128xi32>
    %4 = vector.shape_cast %3 : vector<1x2x128xi32> to vector<2x128xi32>
    %c0_3 = arith.constant 0 : index
    %c0_4 = arith.constant 0 : index
    %c0_5 = arith.constant 0 : index
    %c0_6 = arith.constant 0 : index
    %5 = vector.load %arg2[%c0_3, %c0_4, %c0_5, %c0_6] : memref<1x4x2x128xf32, #tpu.memory_space<vmem>>, vector<1x1x2x128xf32>
    %6 = vector.shape_cast %5 : vector<1x1x2x128xf32> to vector<2x128xf32>
    %c0_7 = arith.constant 0 : index
    %c1 = arith.constant 1 : index
    %c0_8 = arith.constant 0 : index
    %c0_9 = arith.constant 0 : index
    %7 = vector.load %arg2[%c0_7, %c1, %c0_8, %c0_9] : memref<1x4x2x128xf32, #tpu.memory_space<vmem>>, vector<1x1x2x128xf32>
    %8 = vector.shape_cast %7 : vector<1x1x2x128xf32> to vector<2x128xf32>
    %9 = arith.maximumf %6, %8 : vector<2x128xf32>
    %c0_10 = arith.constant 0 : index
    %c2 = arith.constant 2 : index
    %c0_11 = arith.constant 0 : index
    %c0_12 = arith.constant 0 : index
    %10 = vector.load %arg2[%c0_10, %c2, %c0_11, %c0_12] : memref<1x4x2x128xf32, #tpu.memory_space<vmem>>, vector<1x1x2x128xf32>
    %11 = vector.shape_cast %10 : vector<1x1x2x128xf32> to vector<2x128xf32>
    %12 = arith.maximumf %9, %11 : vector<2x128xf32>
    %c0_13 = arith.constant 0 : index
    %c3 = arith.constant 3 : index
    %c0_14 = arith.constant 0 : index
    %c0_15 = arith.constant 0 : index
    %13 = vector.load %arg2[%c0_13, %c3, %c0_14, %c0_15] : memref<1x4x2x128xf32, #tpu.memory_space<vmem>>, vector<1x1x2x128xf32>
    %14 = vector.shape_cast %13 : vector<1x1x2x128xf32> to vector<2x128xf32>
    %15 = arith.maximumf %12, %14 : vector<2x128xf32>
    %cst = arith.constant 0.000000e+00 : f32
    %16 = vector.broadcast %cst : f32 to vector<2x128xf32>
    %cst_16 = arith.constant 0.000000e+00 : f32
    %17 = vector.broadcast %cst_16 : f32 to vector<2x128xf32>
    %cst_17 = arith.constant 0.000000e+00 : f32
    %18 = vector.broadcast %cst_17 : f32 to vector<2x128xf32>
    %c0_18 = arith.constant 0 : index
    %c0_19 = arith.constant 0 : index
    %c0_20 = arith.constant 0 : index
    %c0_21 = arith.constant 0 : index
    %19 = vector.load %arg2[%c0_18, %c0_19, %c0_20, %c0_21] : memref<1x4x2x128xf32, #tpu.memory_space<vmem>>, vector<1x1x2x128xf32>
    %20 = vector.shape_cast %19 : vector<1x1x2x128xf32> to vector<2x128xf32>
    %21 = arith.subf %20, %15 : vector<2x128xf32>
    %22 = math.exp %21 : vector<2x128xf32>
    %23 = arith.addf %16, %22 : vector<2x128xf32>
    %c0_i32_22 = arith.constant 0 : i32
    %24 = vector.broadcast %c0_i32_22 : i32 to vector<2x128xi32>
    %25 = arith.cmpi eq, %4, %24 : vector<2x128xi32>
    %cst_23 = arith.constant 0.000000e+00 : f32
    %26 = vector.broadcast %cst_23 : f32 to vector<2x128xf32>
    %27 = arith.select %25, %20, %26 : vector<2x128xi1>, vector<2x128xf32>
    %28 = arith.addf %17, %27 : vector<2x128xf32>
    %29 = arith.addf %18, %20 : vector<2x128xf32>
    %c0_24 = arith.constant 0 : index
    %c1_25 = arith.constant 1 : index
    %c0_26 = arith.constant 0 : index
    %c0_27 = arith.constant 0 : index
    %30 = vector.load %arg2[%c0_24, %c1_25, %c0_26, %c0_27] : memref<1x4x2x128xf32, #tpu.memory_space<vmem>>, vector<1x1x2x128xf32>
    %31 = vector.shape_cast %30 : vector<1x1x2x128xf32> to vector<2x128xf32>
    %32 = arith.subf %31, %15 : vector<2x128xf32>
    %33 = math.exp %32 : vector<2x128xf32>
    %34 = arith.addf %23, %33 : vector<2x128xf32>
    %c1_i32 = arith.constant 1 : i32
    %35 = vector.broadcast %c1_i32 : i32 to vector<2x128xi32>
    %36 = arith.cmpi eq, %4, %35 : vector<2x128xi32>
    %cst_28 = arith.constant 0.000000e+00 : f32
    %37 = vector.broadcast %cst_28 : f32 to vector<2x128xf32>
    %38 = arith.select %36, %31, %37 : vector<2x128xi1>, vector<2x128xf32>
    %39 = arith.addf %28, %38 : vector<2x128xf32>
    %40 = arith.addf %29, %31 : vector<2x128xf32>
    %c0_29 = arith.constant 0 : index
    %c2_30 = arith.constant 2 : index
    %c0_31 = arith.constant 0 : index
    %c0_32 = arith.constant 0 : index
    %41 = vector.load %arg2[%c0_29, %c2_30, %c0_31, %c0_32] : memref<1x4x2x128xf32, #tpu.memory_space<vmem>>, vector<1x1x2x128xf32>
    %42 = vector.shape_cast %41 : vector<1x1x2x128xf32> to vector<2x128xf32>
    %43 = arith.subf %42, %15 : vector<2x128xf32>
    %44 = math.exp %43 : vector<2x128xf32>
    %45 = arith.addf %34, %44 : vector<2x128xf32>
    %c2_i32 = arith.constant 2 : i32
    %46 = vector.broadcast %c2_i32 : i32 to vector<2x128xi32>
    %47 = arith.cmpi eq, %4, %46 : vector<2x128xi32>
    %cst_33 = arith.constant 0.000000e+00 : f32
    %48 = vector.broadcast %cst_33 : f32 to vector<2x128xf32>
    %49 = arith.select %47, %42, %48 : vector<2x128xi1>, vector<2x128xf32>
    %50 = arith.addf %39, %49 : vector<2x128xf32>
    %51 = arith.addf %40, %42 : vector<2x128xf32>
    %c0_34 = arith.constant 0 : index
    %c3_35 = arith.constant 3 : index
    %c0_36 = arith.constant 0 : index
    %c0_37 = arith.constant 0 : index
    %52 = vector.load %arg2[%c0_34, %c3_35, %c0_36, %c0_37] : memref<1x4x2x128xf32, #tpu.memory_space<vmem>>, vector<1x1x2x128xf32>
    %53 = vector.shape_cast %52 : vector<1x1x2x128xf32> to vector<2x128xf32>
    %54 = arith.subf %53, %15 : vector<2x128xf32>
    %55 = math.exp %54 : vector<2x128xf32>
    %56 = arith.addf %45, %55 : vector<2x128xf32>
    %c3_i32 = arith.constant 3 : i32
    %57 = vector.broadcast %c3_i32 : i32 to vector<2x128xi32>
    %58 = arith.cmpi eq, %4, %57 : vector<2x128xi32>
    %cst_38 = arith.constant 0.000000e+00 : f32
    %59 = vector.broadcast %cst_38 : f32 to vector<2x128xf32>
    %60 = arith.select %58, %53, %59 : vector<2x128xi1>, vector<2x128xf32>
    %61 = arith.addf %50, %60 : vector<2x128xf32>
    %62 = arith.addf %51, %53 : vector<2x128xf32>
    %63 = math.log %56 : vector<2x128xf32>
    %64 = arith.addf %63, %15 : vector<2x128xf32>
    %c0_39 = arith.constant 0 : index
    %c0_40 = arith.constant 0 : index
    %65 = vector.load %arg5[%c0_39, %c0_40] : memref<3x128xf32, #tpu.memory_space<vmem>>, vector<1x128xf32>
    %cst_41 = arith.constant dense<0.000000e+00> : vector<128xf32>
    %66 = vector.multi_reduction <add>, %61, %cst_41 [0] : vector<2x128xf32> to vector<128xf32>
    %67 = vector.shape_cast %66 : vector<128xf32> to vector<1x128xf32>
    %68 = arith.addf %65, %67 : vector<1x128xf32>
    %c0_42 = arith.constant 0 : index
    %c0_43 = arith.constant 0 : index
    %69 = vector.load %arg5[%c0_42, %c0_43] : memref<3x128xf32, #tpu.memory_space<vmem>>, vector<1x128xf32>
    tpu.vector_store %arg5[%c0_42, %c0_43], %68 {strides = array<i32>} : memref<3x128xf32, #tpu.memory_space<vmem>>, vector<1x128xf32>,
    %c1_44 = arith.constant 1 : index
    %c0_45 = arith.constant 0 : index
    %70 = vector.load %arg5[%c1_44, %c0_45] : memref<3x128xf32, #tpu.memory_space<vmem>>, vector<1x128xf32>
    %cst_46 = arith.constant dense<0.000000e+00> : vector<128xf32>
    %71 = vector.multi_reduction <add>, %64, %cst_46 [0] : vector<2x128xf32> to vector<128xf32>
    %72 = vector.shape_cast %71 : vector<128xf32> to vector<1x128xf32>
    %73 = arith.addf %70, %72 : vector<1x128xf32>
    %c1_47 = arith.constant 1 : index
    %c0_48 = arith.constant 0 : index
    %74 = vector.load %arg5[%c1_47, %c0_48] : memref<3x128xf32, #tpu.memory_space<vmem>>, vector<1x128xf32>
    tpu.vector_store %arg5[%c1_47, %c0_48], %73 {strides = array<i32>} : memref<3x128xf32, #tpu.memory_space<vmem>>, vector<1x128xf32>,
    %c2_49 = arith.constant 2 : index
    %c0_50 = arith.constant 0 : index
    %75 = vector.load %arg5[%c2_49, %c0_50] : memref<3x128xf32, #tpu.memory_space<vmem>>, vector<1x128xf32>
    %cst_51 = arith.constant dense<0.000000e+00> : vector<128xf32>
    %76 = vector.multi_reduction <add>, %62, %cst_51 [0] : vector<2x128xf32> to vector<128xf32>
    %77 = vector.shape_cast %76 : vector<128xf32> to vector<1x128xf32>
    %78 = arith.addf %75, %77 : vector<1x128xf32>
    %c2_52 = arith.constant 2 : index
    %c0_53 = arith.constant 0 : index
    %79 = vector.load %arg5[%c2_52, %c0_53] : memref<3x128xf32, #tpu.memory_space<vmem>>, vector<1x128xf32>
    tpu.vector_store %arg5[%c2_52, %c0_53], %78 {strides = array<i32>} : memref<3x128xf32, #tpu.memory_space<vmem>>, vector<1x128xf32>,
    %c0_i32_54 = arith.constant 0 : i32
    %80 = arith.cmpi eq, %arg1, %c0_i32_54 : i32
    %81 = arith.extui %80 : i1 to i32
    %c0_i32_55 = arith.constant 0 : i32
    %82 = arith.cmpi ne, %81, %c0_i32_55 : i32
    scf.if %82 {
      %c0_56 = arith.constant 0 : index
      %c0_57 = arith.constant 0 : index
      %83 = vector.load %arg5[%c0_56, %c0_57] : memref<3x128xf32, #tpu.memory_space<vmem>>, vector<1x128xf32>
      %cst_58 = arith.constant dense<0.000000e+00> : vector<1xf32>
      %84 = vector.multi_reduction <add>, %83, %cst_58 [1] : vector<1x128xf32> to vector<1xf32>
      %85 = vector.shape_cast %84 : vector<1xf32> to vector<1x1xf32>
      %c1_59 = arith.constant 1 : index
      %c0_60 = arith.constant 0 : index
      %86 = vector.load %arg5[%c1_59, %c0_60] : memref<3x128xf32, #tpu.memory_space<vmem>>, vector<1x128xf32>
      %cst_61 = arith.constant dense<0.000000e+00> : vector<1xf32>
      %87 = vector.multi_reduction <add>, %86, %cst_61 [1] : vector<1x128xf32> to vector<1xf32>
      %88 = vector.shape_cast %87 : vector<1xf32> to vector<1x1xf32>
      %c2_62 = arith.constant 2 : index
      %c0_63 = arith.constant 0 : index
      %89 = vector.load %arg5[%c2_62, %c0_63] : memref<3x128xf32, #tpu.memory_space<vmem>>, vector<1x128xf32>
      %cst_64 = arith.constant dense<0.000000e+00> : vector<1xf32>
      %90 = vector.multi_reduction <add>, %89, %cst_64 [1] : vector<1x128xf32> to vector<1xf32>
      %91 = vector.shape_cast %90 : vector<1xf32> to vector<1x1xf32>
      %cst_65 = arith.constant 2.000000e+00 : f32
      %92 = vector.broadcast %cst_65 : f32 to vector<1x1xf32>
      %93 = arith.mulf %92, %85 : vector<1x1xf32>
      %cst_66 = arith.constant 2.560000e+02 : f32
      %94 = vector.broadcast %cst_66 : f32 to vector<1x1xf32>
      %95 = arith.addf %91, %94 : vector<1x1xf32>
      %cst_67 = arith.constant 9.99999997E-7 : f32
      %96 = vector.broadcast %cst_67 : f32 to vector<1x1xf32>
      %97 = arith.addf %95, %96 : vector<1x1xf32>
      %98 = arith.divf %93, %97 : vector<1x1xf32>
      %cst_68 = arith.constant 1.000000e+00 : f32
      %99 = vector.broadcast %cst_68 : f32 to vector<1x1xf32>
      %100 = arith.subf %99, %98 : vector<1x1xf32>
      %101 = arith.subf %88, %85 : vector<1x1xf32>
      %cst_69 = arith.constant 2.560000e+02 : f32
      %102 = vector.broadcast %cst_69 : f32 to vector<1x1xf32>
      %103 = arith.divf %101, %102 : vector<1x1xf32>
      %104 = arith.addf %100, %103 : vector<1x1xf32>
      %c0_70 = arith.constant 0 : index
      %c0_71 = arith.constant 0 : index
      %c0_72 = arith.constant 0 : index
      %105 = vector.load %arg4[%c0_70, %c0_71, %c0_72] : memref<1x1x1xf32, #tpu.memory_space<vmem>>, vector<1x1x1xf32>
      %106 = vector.shape_cast %105 : vector<1x1x1xf32> to vector<1x1xf32>
      %107 = vector.shape_cast %104 : vector<1x1xf32> to vector<1x1x1xf32>
      tpu.vector_store %arg4[%c0_70, %c0_71, %c0_72], %107 {strides = array<i32>} : memref<1x1x1xf32, #tpu.memory_space<vmem>>, vector<1x1x1xf32>,
    } else {
    }
    return
  }
  func.func @transform_0(%arg0: i32, %arg1: i32) -> (i32, i32, i32, i32) {
    %c0_i32 = arith.constant 0 : i32
    %c0_i32_0 = arith.constant 0 : i32
    %c0_i32_1 = arith.constant 0 : i32
    return %arg0, %c0_i32, %arg1, %c0_i32_0 : i32, i32, i32, i32
  }
  func.func @transform_1(%arg0: i32, %arg1: i32) -> (i32, i32, i32) {
    %c0_i32 = arith.constant 0 : i32
    %c0_i32_0 = arith.constant 0 : i32
    return %arg0, %arg1, %c0_i32 : i32, i32, i32
  }
  func.func @transform_2(%arg0: i32, %arg1: i32) -> (i32, i32, i32) {
    %c0_i32 = arith.constant 0 : i32
    %c0_i32_0 = arith.constant 0 : i32
    %c0_i32_1 = arith.constant 0 : i32
    return %arg0, %c0_i32, %c0_i32_0 : i32, i32, i32
  }
}

</mosaic_0001>

<llo_original>
// kernel: tpu_custom_call.1
$region0: #{tpu_custom_call.1}
  #allocation0 [shape = 'u32[]', space=smem, size = 0x4, offset = 0x4, fixed_abs, tag = 'smem constant byte address 0x4 - core index']
  #allocation1 [shape = 'u32[72,128]{1,0:T(1,128)}', space=vmem, size = 0x9000, scoped, tag = 'internal scratch']
  #allocation2 [shape = 'f32[3,128]{1,0:T(4,128)}', space=vmem, size = 0x800, scoped, tag = 'scratch operand']
  %s0 = inlined_call_operand.hbm [shape: f32[2,4,2,128], index: 0, kind: input, shape index: {}]
  %s1 = inlined_call_operand.hbm [shape: s32[2,2,128], index: 1, kind: input, shape index: {}]
  %s2 = inlined_call_operand.vmem [shape: f32[2,1,1], index: 2, kind: output, shape index: {}]
  %s3 = sld [smem:[#allocation0]]
  $region57: #{tpu_custom_call.1} parent=0
    _
  %s5 = ssub.s32 1, %s3
  %s6 = scalar_select 0, %s5, %s3
  $region1: #{tpu_custom_call.1} parent=0
    #allocation3 [shape = 'u8[8192]{0}', space=vmem, size = 0x2000, scoped, tag = 'input window, operand 0']
    #allocation4 [shape = 's32[2]{0}', space=sflag, size = 0x8, scoped, tag = 'scoped memory for tpu_custom_call.1']
    #allocation5 [shape = 'u8[2048]{0}', space=vmem, size = 0x800, scoped, tag = 'input window, operand 1']
    #allocation6 [shape = 's32[2]{0}', space=sflag, size = 0x8, scoped, tag = 'scoped memory for tpu_custom_call.1']
    %7 = vsyncpa [#allocation4], 0
    %s8 = scalar_lea.sflag [#allocation4], 1
    %9 = vsyncpa %s8, 0
    %10 = vsyncpa [#allocation6], 0
    %s11 = scalar_lea.sflag [#allocation6], 1
    %12 = vsyncpa %s11, 0
    loop: start=0, step=1, limit=4
    $region2: #{tpu_custom_call.1} parent=1 // loop_pre_header
      _
    $region3: #{tpu_custom_call.1} parent=1 // loop_header
      %s14 = sphi 0, %s18
      %p15 = scmp.ge.s32.totalorder %s14, 4
      %s21 = sphi 0, %s33
      %s22 = sphi 0, %s29
      %s23 = sphi 0, %s21
      %s24 = sphi 0, %s22
      %s25 = sphi 0, %s23
      %s26 = sphi 0, %s24
      %s38 = sphi 0, %s40
      %s41 = sphi 0, %s38
      %s42 = sphi 0, %s41
      %s58 = sphi 0, %s42
      %s66 = sphi 0, %s68
      %s69 = sphi 0, %s66
      %s70 = sphi 0, %s69
      %s86 = sphi 0, %s70
      %s92 = sphi 0, %s94
      %s95 = sphi 0, %s92
      %s96 = sphi 0, %s95
      %s112 = sphi 0, %s96
    $region4: #{tpu_custom_call.1} parent=1 // loop_header_branch
      %17 = sbr.rel (%p15) target = $region8
    $region5: #{tpu_custom_call.1} parent=1 // loop_body
      %s19 = ssub.s32 %s14, 1
      %s20 = ssub.s32 %s14, 2
      %s27 = sadd.s32 1, %s22
      %p28 = scmp.ge.s32.totalorder %s27, 1
      %s29 = scalar_select %p28, 0, %s27
      %s30 = sadd.s32 1, %s21
      %s31 = scalar_select %p28, %s30, %s21
      %p32 = scmp.ge.s32.totalorder %s31, 2
      %s33 = scalar_select %p32, 0, %s31
      %s34 = ssub.s32 %s21, %s33
      %s35 = ssub.s32 %s22, %s29
      %s36 = sor.u32 %s34, %s35
      %p37 = scmp.eq.s32.totalorder %s36, 0
      %s39 = sadd.s32 %s38, 1
      %s40 = scalar_select %p37, %s38, %s39
      %p43 = pneg %p37
      %p44 = scmp.eq.s32.totalorder %s14, 1
      %p45 = por %p43, %p44
      %p46 = scmp.ne.s32.totalorder %s38, %s41
      %p47 = scmp.eq.s32.totalorder %s14, 0
      %p48 = por %p46, %p47
      %p49 = scmp.ne.s32.totalorder %s38, %s41
      %p50 = scmp.eq.s32.totalorder %s19, 1
      %p51 = por %p49, %p50
      %p52 = scmp.ne.s32.totalorder %s41, %s42
      %p53 = scmp.eq.s32.totalorder %s19, 0
      %p54 = por %p52, %p53
      %p55 = scmp.ne.s32.totalorder %s41, %s42
      %p56 = scmp.eq.s32.totalorder %s20, 1
      %p57 = por %p55, %p56
      %p59 = scmp.ne.s32.totalorder %s42, %s58
      %p60 = scmp.eq.s32.totalorder %s20, 0
      %p61 = por %p59, %p60
      %s62 = ssub.s32 %s21, %s33
      %s63 = ssub.s32 %s22, %s29
      %s64 = sor.u32 %s62, %s63
      %p65 = scmp.eq.s32.totalorder %s64, 0
      %s67 = sadd.s32 %s66, 1
      %s68 = scalar_select %p65, %s66, %s67
      %p71 = pneg %p65
      %p72 = scmp.eq.s32.totalorder %s14, 1
      %p73 = por %p71, %p72
      %p74 = scmp.ne.s32.totalorder %s66, %s69
      %p75 = scmp.eq.s32.totalorder %s14, 0
      %p76 = por %p74, %p75
      %p77 = scmp.ne.s32.totalorder %s66, %s69
      %p78 = scmp.eq.s32.totalorder %s19, 1
      %p79 = por %p77, %p78
      %p80 = scmp.ne.s32.totalorder %s69, %s70
      %p81 = scmp.eq.s32.totalorder %s19, 0
      %p82 = por %p80, %p81
      %p83 = scmp.ne.s32.totalorder %s69, %s70
      %p84 = scmp.eq.s32.totalorder %s20, 1
      %p85 = por %p83, %p84
      %p87 = scmp.ne.s32.totalorder %s70, %s86
      %p88 = scmp.eq.s32.totalorder %s20, 0
      %p89 = por %p87, %p88
      %s90 = ssub.s32 %s21, %s33
      %p91 = scmp.eq.s32.totalorder %s90, 0
      %s93 = sadd.s32 %s92, 1
      %s94 = scalar_select %p91, %s92, %s93
      %p97 = pneg %p91
      %p98 = scmp.eq.s32.totalorder %s14, 1
      %p99 = por %p97, %p98
      %p100 = scmp.ne.s32.totalorder %s92, %s95
      %p101 = scmp.eq.s32.totalorder %s14, 0
      %p102 = por %p100, %p101
      %p103 = scmp.ne.s32.totalorder %s92, %s95
      %p104 = scmp.eq.s32.totalorder %s19, 1
      %p105 = por %p103, %p104
      %p106 = scmp.ne.s32.totalorder %s95, %s96
      %p107 = scmp.eq.s32.totalorder %s19, 0
      %p108 = por %p106, %p107
      %p109 = scmp.ne.s32.totalorder %s95, %s96
      %p110 = scmp.eq.s32.totalorder %s20, 1
      %p111 = por %p109, %p110
      %p113 = scmp.ne.s32.totalorder %s96, %s112
      %p114 = scmp.eq.s32.totalorder %s20, 0
      %p115 = por %p113, %p114
      %p116 = scmp.le.s32.totalorder 1, %s14
      %p117 = scmp.lt.s32.totalorder %s14, 3
      %p118 = pnand %p116, %p117
      %p119 = pneg %p118
      // Predicated region
      $region9: #{tpu_custom_call.1} parent=5 // pred_check
        _
      $region10: #{tpu_custom_call.1} parent=5 // pred_check_branch
        %121 = sbr.rel (%p118) target = $region12
      $region11: #{tpu_custom_call.1} parent=5 // pred_region
        %s122 = ssub.s32 %s14, 1
      $region12: #{tpu_custom_call.1} parent=5 // pred_fallthru
        _
      %p123 = scmp.lt.s32.totalorder %s14, 2
      // Predicated region
      $region13: #{tpu_custom_call.1} parent=5 // pred_check
        %p124 = pneg %p123
      $region14: #{tpu_custom_call.1} parent=5 // pred_check_branch
        %126 = sbr.rel (%p124) target = $region16
      $region15: #{tpu_custom_call.1} parent=5 // pred_region
        // Predicated region
        $region17: #{tpu_custom_call.1} parent=15 // pred_check
          %p127 = pneg %p48
        $region18: #{tpu_custom_call.1} parent=15 // pred_check_branch
          %129 = sbr.rel (%p127) target = $region20
        $region19: #{tpu_custom_call.1} parent=15 // pred_region
          %s130 = sand.u32 %s38, 1
          %s131 = scalar_lea.sflag [#allocation4], %s130
          %s132 = sand.u32 %s38, 1
          %s133 = smul.addr %s132, 8
          %s134 = scalar_lea.vmem [#allocation3], %s133
          %136 = vsyncadd %s131, 0
          %s137 = smul.addr %s21, 4
          %s138 = sadd.s32 %s22, %s137
          %s139 = smul.addr %s138, 2
          %s140 = scalar_lea.hbm %s0, %s139
          %s141 = sshll.u32 %s140, 4
          %s142 = int_to_ptr.hbm [resolvable:$true] %s141
          %s143 = sshll.u32 %s134, 4
          %s144 = int_to_ptr.vmem [resolvable:$true] %s143
          %149 = dma.hbm_to_vmem [thread:$0]  %s142, 128, %s144, %s131, 32, 32, 2
        $region20: #{tpu_custom_call.1} parent=15 // pred_fallthru
          _
        // Predicated region
        $region21: #{tpu_custom_call.1} parent=15 // pred_check
          %p150 = pneg %p76
        $region22: #{tpu_custom_call.1} parent=15 // pred_check_branch
          %152 = sbr.rel (%p150) target = $region24
        $region23: #{tpu_custom_call.1} parent=15 // pred_region
          %s153 = sand.u32 %s66, 1
          %s154 = scalar_lea.sflag [#allocation6], %s153
          %s155 = sand.u32 %s66, 1
          %s156 = smul.addr %s155, 2
          %s157 = scalar_lea.vmem [#allocation5], %s156
          %159 = vsyncadd %s154, 0
          %s160 = sadd.s32 %s22, %s21
          %s161 = smul.addr %s160, 2
          %s162 = scalar_lea.hbm %s1, %s161
          %s164 = sshll.u32 %s162, 4
          %s165 = int_to_ptr.hbm [resolvable:$true] %s164
          %s166 = sshll.u32 %s157, 4
          %s167 = int_to_ptr.vmem [resolvable:$true] %s166
          %169 = dma.hbm_to_vmem [thread:$0]  %s165, 32, %s167, %s154
        $region24: #{tpu_custom_call.1} parent=15 // pred_fallthru
          _
      $region16: #{tpu_custom_call.1} parent=5 // pred_fallthru
        _
      %p170 = scmp.le.s32.totalorder 1, %s14
      %p171 = scmp.lt.s32.totalorder %s14, 3
      %p172 = pnand %p170, %p171
      %p173 = pneg %p172
      // Predicated region
      $region25: #{tpu_custom_call.1} parent=5 // pred_check
        _
      $region26: #{tpu_custom_call.1} parent=5 // pred_check_branch
        %175 = sbr.rel (%p172) target = $region28
      $region27: #{tpu_custom_call.1} parent=5 // pred_region
        %s176 = ssub.s32 %s14, 1
        %s177 = sand.u32 %s41, 1
        %s178 = scalar_lea.sflag [#allocation4], %s177
        %s179 = sand.u32 %s41, 1
        %s180 = smul.addr %s179, 8
        %s181 = scalar_lea.vmem [#allocation3], %s180
        // Predicated region
        $region29: #{tpu_custom_call.1} parent=27 // pred_check
          %p182 = pneg %p54
        $region30: #{tpu_custom_call.1} parent=27 // pred_check_branch
          %184 = sbr.rel (%p182) target = $region32
        $region31: #{tpu_custom_call.1} parent=27 // pred_region
          %186 = dma.done %s178, 128
        $region32: #{tpu_custom_call.1} parent=27 // pred_fallthru
          _
        %s187 = sand.u32 %s69, 1
        %s188 = scalar_lea.sflag [#allocation6], %s187
        %s189 = sand.u32 %s69, 1
        %s190 = smul.addr %s189, 2
        %s191 = scalar_lea.vmem [#allocation5], %s190
        // Predicated region
        $region33: #{tpu_custom_call.1} parent=27 // pred_check
          %p192 = pneg %p82
        $region34: #{tpu_custom_call.1} parent=27 // pred_check_branch
          %194 = sbr.rel (%p192) target = $region36
        $region35: #{tpu_custom_call.1} parent=27 // pred_region
          %196 = dma.done %s188, 32
        $region36: #{tpu_custom_call.1} parent=27 // pred_fallthru
          _
        %s197 = sand.u32 %s41, 1
        %s198 = scalar_lea.sflag [#allocation4], %s197
        %s199 = sand.u32 %s41, 1
        %s200 = smul.addr %s199, 8
        %s201 = scalar_lea.vmem [#allocation3], %s200
        %p202 = pneg %p54
        %p203 = pneg %p51
        %s204 = sand.u32 %s69, 1
        %s205 = scalar_lea.sflag [#allocation6], %s204
        %s206 = sand.u32 %s69, 1
        %s207 = smul.addr %s206, 2
        %s208 = scalar_lea.vmem [#allocation5], %s207
        %p209 = pneg %p82
        %p210 = pneg %p79
        %p211 = pneg %p108
        %p212 = pneg %p105
        %p213 = scmp.lt.s32.totalorder %s23, 1
        %s214 = scalar_select %p213, %s23, 1
        %s215 = scalar_lea.vmem %s2, %s214
        %p216 = scmp.lt.s32.totalorder %s23, 1
        %s217 = scalar_select %p216, %s23, 1
        %s218 = scalar_lea.vmem %s2, %s217
        %p219 = scmp.eq.s32.totalorder %s24, 0
        // Predicated region
        $region37: #{tpu_custom_call.1} parent=27 // pred_check
          %p220 = pneg %p219
        $region38: #{tpu_custom_call.1} parent=27 // pred_check_branch
          %222 = sbr.rel (%p220) target = $region40
        $region39: #{tpu_custom_call.1} parent=27 // pred_region
          %223 = vst [vmem:[#allocation2] sm:$0x7] 0.0
        $region40: #{tpu_custom_call.1} parent=27 // pred_fallthru
          _
        %v224 = vld [vmem:[%s191] sm:$0x3]
        %v225 = vld [vmem:[%s181] sm:$0x3]
        %s226 = scalar_lea.vmem %s181, 2 [#allocation3]
        %v227 = vld [vmem:[%s226] sm:$0x3]
        %v228 = vmax.f32 %v225, %v227
        %s229 = scalar_lea.vmem %s181, 4 [#allocation3]
        %v230 = vld [vmem:[%s229] sm:$0x3]
        %v231 = vmax.f32 %v228, %v230
        %s232 = scalar_lea.vmem %s181, 6 [#allocation3]
        %v233 = vld [vmem:[%s232] sm:$0x3]
        %v234 = vmax.f32 %v231, %v233
        %v235 = vsub.f32 %v225, %v234
        %v236 = vmul.f32 %v235, 1.442695
        %v237 = vpow.pop %v236
        %v238 = vadd.f32 %v237, 0.0
        %vm239 = vcmp.eq.s32.totalorder %v224, 0
        %v240 = vsel %vm239, %v225, 0.0
        %v241 = vadd.f32 %v240, 0.0
        %v242 = vadd.f32 %v225, 0.0
        %v243 = vsub.f32 %v227, %v234
        %v244 = vmul.f32 %v243, 1.442695
        %v245 = vpow.pop %v244
        %v246 = vadd.f32 %v238, %v245
        %vm247 = vcmp.eq.s32.totalorder %v224, 1
        %v248 = vsel %vm247, %v227, 0.0
        %v249 = vadd.f32 %v241, %v248
        %v250 = vadd.f32 %v242, %v227
        %v251 = vsub.f32 %v230, %v234
        %v252 = vmul.f32 %v251, 1.442695
        %v253 = vpow.pop %v252
        %v254 = vadd.f32 %v246, %v253
        %vm255 = vcmp.eq.s32.totalorder %v224, 2
        %v256 = vsel %vm255, %v230, 0.0
        %v257 = vadd.f32 %v249, %v256
        %v258 = vadd.f32 %v250, %v230
        %v259 = vsub.f32 %v233, %v234
        %v260 = vmul.f32 %v259, 1.442695
        %v261 = vpow.pop %v260
        %v262 = vadd.f32 %v254, %v261
        %vm263 = vcmp.eq.s32.totalorder %v224, 3
        %v264 = vsel %vm263, %v233, 0.0
        %v265 = vadd.f32 %v257, %v264
        %v266 = vadd.f32 %v258, %v233
        %v267 = vlog2.pop %v262
        %v268 = vmul.f32 %v267, 0.6931472
        %v269 = vadd.f32 %v268, %v234
        %v270 = vld [vmem:[#allocation2] sm:$0x1]
        %vm271 = vcmask 1041408
        %v272 = vsel %vm271, %v265, 0.0
        %v273 = vrot.slane %v272, 4
        %v274 = vadd.f32 %v272, %v273
        %v275 = vrot.slane %v274, 2
        %v276 = vadd.f32 %v274, %v275
        %v277 = vrot.slane %v276, 1
        %v278 = vadd.f32 %v276, %v277
        %v279 = vadd.f32 %v270, %v278
        %280 = vst [vmem:[#allocation2] sm:$0x1] %v279
        %v281 = vld [vmem:[#allocation2 + $0x1] sm:$0x1]
        %v282 = vsel %vm271, %v269, 0.0
        %v283 = vrot.slane %v282, 4
        %v284 = vadd.f32 %v282, %v283
        %v285 = vrot.slane %v284, 2
        %v286 = vadd.f32 %v284, %v285
        %v287 = vrot.slane %v286, 1
        %v288 = vadd.f32 %v286, %v287
        %v289 = vadd.f32 %v281, %v288
        %290 = vst [vmem:[#allocation2 + $0x1] sm:$0x1] %v289
        %v291 = vld [vmem:[#allocation2 + $0x2] sm:$0x1]
        %v292 = vsel %vm271, %v266, 0.0
        %v293 = vrot.slane %v292, 4
        %v294 = vadd.f32 %v292, %v293
        %v295 = vrot.slane %v294, 2
        %v296 = vadd.f32 %v294, %v295
        %v297 = vrot.slane %v296, 1
        %v298 = vadd.f32 %v296, %v297
        %v299 = vadd.f32 %v291, %v298
        %300 = vst [vmem:[#allocation2 + $0x2] sm:$0x1] %v299
        // Predicated region
        $region41: #{tpu_custom_call.1} parent=27 // pred_check
          %p301 = pneg %p219
        $region42: #{tpu_custom_call.1} parent=27 // pred_check_branch
          %303 = sbr.rel (%p301) target = $region44
        $region43: #{tpu_custom_call.1} parent=27 // pred_region
          %v304 = vld [vmem:[#allocation2] sm:$0x1]
          %vm305 = vcmask 1040384
          %v306 = vsel %vm305, %v304, 0.0
          %307 = vadd.xlane.f32.xlu0 %v306
          %v308 = vpop.xlane.xlu0 %307
          %v309 = vld [vmem:[#allocation2 + $0x1] sm:$0x1]
          %v310 = vsel %vm305, %v309, 0.0
          %311 = vadd.xlane.f32.xlu0 %v310
          %v312 = vpop.xlane.xlu0 %311
          %v313 = vld [vmem:[#allocation2 + $0x2] sm:$0x1]
          %v314 = vsel %vm305, %v313, 0.0
          %315 = vadd.xlane.f32.xlu0 %v314
          %v316 = vpop.xlane.xlu0 %315
          %v317 = vmul.f32 %v308, 2.0
          %v318 = vadd.f32 %v316, 256.0
          %v319 = vadd.f32 %v318, 1e-06
          %v320 = vrcp.pop %v319
          %v321 = vmul.f32 %v319, %v320
          %v322 = vsub.f32 1.0, %v321
          %v323 = vmul.f32 %v320, %v322
          %v324 = vadd.f32 %v320, %v323
          %vm325 = vweird.f32 %v319
          %vm326 = vweird.f32 %v320
          %vm327 = vmor %vm325, %vm326
          %v328 = vsel %vm327, %v320, %v324
          %v329 = vand.u32 2147483647, %v319
          %vm330 = vcmp.eq.f32.partialorder %v329, 8.507059e+37
          %v331 = vand.u32 %v319, 2147483648
          %v332 = vor.u32 1.1754944e-38, %v331
          %v333 = vsel %vm330, %v332, %v328
          %v334 = vmul.f32 %v317, %v333
          %v335 = vsub.f32 1.0, %v334
          %v336 = vsub.f32 %v312, %v308
          %v337 = vrcp.pop 256.0
          %v338 = vmul.f32 256.0, %v337
          %v339 = vsub.f32 1.0, %v338
          %v340 = vmul.f32 %v337, %v339
          %v341 = vadd.f32 %v337, %v340
          %vm342 = vweird.f32 %v337
          %v343 = vsel %vm342, %v337, %v341
          %v344 = vmul.f32 %v336, %v343
          %v345 = vadd.f32 %v335, %v344
          %vm346 = vcmask 0
          %347 = vst.msk [vmem:[%s218] sm:$0x1] %vm346, %v345
        $region44: #{tpu_custom_call.1} parent=27 // pred_fallthru
          _
        %p348 = scmp.lt.s32.totalorder %s23, 1
        %s349 = scalar_select %p348, %s23, 1
        %s350 = scalar_lea.vmem %s2, %s349
        // Predicated region
        $region45: #{tpu_custom_call.1} parent=27 // pred_check
          %p351 = pneg %p105
        $region46: #{tpu_custom_call.1} parent=27 // pred_check_branch
          %353 = sbr.rel (%p351) target = $region48
        $region47: #{tpu_custom_call.1} parent=27 // pred_region
          _
        $region48: #{tpu_custom_call.1} parent=27 // pred_fallthru
          _
      $region28: #{tpu_custom_call.1} parent=5 // pred_fallthru
        _
      %p354 = scmp.le.s32.totalorder 2, %s14
      // Predicated region
      $region49: #{tpu_custom_call.1} parent=5 // pred_check
        %p355 = pneg %p354
      $region50: #{tpu_custom_call.1} parent=5 // pred_check_branch
        %357 = sbr.rel (%p355) target = $region52
      $region51: #{tpu_custom_call.1} parent=5 // pred_region
        %s358 = ssub.s32 %s14, 2
        // Predicated region
        $region53: #{tpu_custom_call.1} parent=51 // pred_check
          %p359 = pneg %p111
        $region54: #{tpu_custom_call.1} parent=51 // pred_check_branch
          %361 = sbr.rel (%p359) target = $region56
        $region55: #{tpu_custom_call.1} parent=51 // pred_region
          %p362 = scmp.lt.s32.totalorder %s25, 1
          %s363 = scalar_select %p362, %s25, 1
          %s364 = scalar_lea.vmem %s2, %s363
        $region56: #{tpu_custom_call.1} parent=51 // pred_fallthru
          _
      $region52: #{tpu_custom_call.1} parent=5 // pred_fallthru
        _
    $region6: #{tpu_custom_call.1} parent=1 // loop_footer
      %s18 = sadd.s32 1, %s14
    $region7: #{tpu_custom_call.1} parent=1 // loop_footer_branch
      %13 = sbr.rel target = $region3
    $region8: #{tpu_custom_call.1} parent=1 // loop_exit
      _
    %365 = vsyncpa [#allocation4], 1
    %s366 = scalar_lea.sflag [#allocation4], 1
    %367 = vsyncpa %s366, 1
    %368 = vsyncpa [#allocation6], 1
    %s369 = scalar_lea.sflag [#allocation6], 1
    %370 = vsyncpa %s369, 1

</llo_original>
